<compile_context>
chip_gen: v7x
topology: tpu7x:2x2x1
jax: 0.10.0
libtpu: 0.0.40
codegen_flags: <defaults>
</compile_context>

<pallas_src>
import jax
import jax.numpy as jnp
from jax.experimental import pallas as pl
from jax.experimental.pallas import tpu as pltpu


# ---------------------------------------------------------------------------
# Parameter construction (glue, plain JAX) — mirrors MMILayerMatrix_Odd.__init__
# but produces only tridiagonal coefficient vectors instead of a dense matrix.
# ---------------------------------------------------------------------------
def build_mmi_odd_coeffs(n_inputs, mmi_i_losses=None, mmi_imbalances=None):
    """Returns (d, k_up, k_dn), each of shape (n_inputs, 1):
         d    : real diagonal  [1, tau0, tau0, tau1, tau1, ..., 1]
         k_up : superdiagonal imaginary coeff aligned to rows 0..N-2 (row N-1 = 0)
         k_dn : subdiagonal   imaginary coeff aligned to rows 1..N-1 (row 0   = 0)
    """
    if n_inputs % 2 == 1:
        raise Exception("n_inputs is odd!!! NONONO, put it even!!!")
    n_mmi = n_inputs // 2 - 1

    if mmi_i_losses is None or mmi_imbalances is None:
        i_loss = jnp.ones((n_mmi,), jnp.float32)
        tau = 0.5 * i_loss
        kappa = tau
    else:
        i_loss = jnp.asarray(mmi_i_losses, jnp.float32)
        imb = jnp.asarray(mmi_imbalances, jnp.float32)
        alpha = 0.5 * (imb - 1.0) / (imb + 1.0)
        tau = 0.5 + alpha
        kappa = 0.5 - alpha

    tau_tf = jnp.sqrt(i_loss) * jnp.sqrt(tau)       # real diag entry of each 2x2 block
    kappa_tf = jnp.sqrt(i_loss) * jnp.sqrt(kappa)   # imag off-diag entry (actual value = j * this)

    d = jnp.concatenate(
        [jnp.ones((1,), jnp.float32), jnp.repeat(tau_tf, 2), jnp.ones((1,), jnp.float32)]
    )
    # k_off[i] couples rows i and i+1; nonzero at i = 1, 3, ..., n-3.
    k_off = jnp.zeros((n_inputs - 1,), jnp.float32)
    k_off = k_off.at[1 : n_inputs - 2 : 2].set(kappa_tf)

    # Zero-padded, row-aligned views for the roll-based single-store kernel.
    # Explicit zeros at row N-1 (k_up) and row 0 (k_dn) mask roll wrap-around.
    k_up = jnp.concatenate([k_off, jnp.zeros((1,), jnp.float32)])
    k_dn = jnp.concatenate([jnp.zeros((1,), jnp.float32), k_off])

    return (d.reshape(n_inputs, 1),
            k_up.reshape(n_inputs, 1),
            k_dn.reshape(n_inputs, 1))


# ---------------------------------------------------------------------------
# Pallas kernel: tridiagonal complex apply — full-tile VPU math, one unmasked
# store per output, row shifts via XLU sublane rotation (pltpu.roll).
# ---------------------------------------------------------------------------
def _mmi_odd_kernel(d_ref, kup_ref, kdn_ref, xr_ref, xi_ref, yr_ref, yi_ref):
    d = d_ref[...]        # (N, 1) real diagonal
    k_up = kup_ref[...]   # (N, 1) superdiag coeff, 0 at row N-1
    k_dn = kdn_ref[...]   # (N, 1) subdiag   coeff, 0 at row 0
    xr = xr_ref[...]      # (N, T)
    xi = xi_ref[...]

    n = d.shape[0]
    # Row shifts (sublane rotation, XLU): element i <- x[i+1] / x[i-1].
    # Wrap-around rows are multiplied by the explicit zeros in k_up / k_dn.
    xr_up = pltpu.roll(xr, n - 1, 0)   # row i holds xr[i+1]
    xi_up = pltpu.roll(xi, n - 1, 0)
    xr_dn = pltpu.roll(xr, 1, 0)       # row i holds xr[i-1]
    xi_dn = pltpu.roll(xi, 1, 0)

    # Complex tridiagonal apply; each output stored exactly once (full tile).
    yr_ref[...] = d * xr - k_up * xi_up - k_dn * xi_dn
    yi_ref[...] = d * xi + k_up * xr_up + k_dn * xr_dn


def _choose_tile(n, m, tile_m):
    """Pick a lane-dense column tile: big enough to amortize per-step overhead,
    small enough to keep >=2 grid steps (v7x megacore) and a modest VMEM footprint."""
    m128 = ((m + 127) // 128) * 128
    if tile_m is None:
        target_bytes = 2 * 1024 * 1024                 # ~2 MiB per array per block
        tile = target_bytes // (4 * n)
    else:
        tile = int(tile_m)
    tile = max(128, (tile // 128) * 128)
    tile = min(tile, m128)
    # VMEM cap: double-buffered (2 in + 2 out) f32 blocks <= ~24 MiB.
    vmem_cap_cols = max(128, ((24 * 1024 * 1024) // (32 * n) // 128) * 128)
    tile = min(tile, vmem_cap_cols)
    # Guarantee >=2 grid steps when the data allows it (v7x TensorCore split).
    if m128 >= 256 and tile > m128 // 2:
        tile = max(128, ((m128 // 2) // 128) * 128)
    return tile


def mmi_layer_matrix_odd_forward(d, k_up, k_dn, x_r, x_i, *, tile_m=None):
    """Computes A @ X for the complex MMI matrix encoded by (d, k_up, k_dn).

    x_r, x_i: (n_inputs, M) float32 real/imag parts of x_matrix.
    Returns (y_r, y_i) of shape (n_inputs, M).
    """
    n, m = x_r.shape
    x_r = x_r.astype(jnp.float32)
    x_i = x_i.astype(jnp.float32)

    tile = _choose_tile(n, m, tile_m)
    grid = (pl.cdiv(m, tile),)          # ragged last block handled by Pallas; no pad/slice

    x_spec = pl.BlockSpec((n, tile), lambda j: (0, j))
    c_spec = pl.BlockSpec((n, 1), lambda j: (0, 0))      # coeffs stay VMEM-resident

    # Double-buffered footprint: 2 bufs x (2 in + 2 out) x n x tile x 4 B (+ tiny coeffs).
    block_bytes = 2 * 4 * n * tile * 4
    vmem_limit = int(min(64 * 1024 * 1024, max(32 * 1024 * 1024, 2 * block_bytes)))

    yr, yi = pl.pallas_call(
        _mmi_odd_kernel,
        out_shape=(jax.ShapeDtypeStruct((n, m), jnp.float32),
                   jax.ShapeDtypeStruct((n, m), jnp.float32)),
        grid=grid,
        in_specs=[c_spec, c_spec, c_spec, x_spec, x_spec],
        out_specs=(x_spec, x_spec),
        compiler_params=pltpu.CompilerParams(
            dimension_semantics=("parallel",),
            vmem_limit_bytes=vmem_limit),
    )(d, k_up, k_dn, x_r, x_i)
    return yr, yi


if __name__ == "__main__":
    N_INPUTS = 8      # number of optical modes (must be even)
    M_COLS = 640      # columns of x_matrix (not a multiple of the tile, on purpose)

    # Deterministic parameters (default __init__ path: unit losses, balanced MMIs)
    d_vec, k_up_vec, k_dn_vec = build_mmi_odd_coeffs(N_INPUTS)

    # Deterministic complex input x_matrix of shape (N_INPUTS, M_COLS)
    key = jax.random.PRNGKey(0)
    k1, k2 = jax.random.split(key)
    X_r = jax.random.normal(k1, (N_INPUTS, M_COLS), jnp.float32)
    X_i = jax.random.normal(k2, (N_INPUTS, M_COLS), jnp.float32)

    # Small tile to exercise the multi-step grid + ragged last block path.
    Y_r, Y_i = mmi_layer_matrix_odd_forward(d_vec, k_up_vec, k_dn_vec, X_r, X_i,
                                            tile_m=256)
    Y_r = jax.block_until_ready(Y_r)
    Y_i = jax.block_until_ready(Y_i)

    # Reference check against plain-JAX dense complex matmul.
    k_off = k_up_vec[:-1, 0]
    A_c = (jnp.diag(d_vec[:, 0])
           + 1j * (jnp.diag(k_off, k=1) + jnp.diag(k_off, k=-1))).astype(jnp.complex64)
    X_c = X_r.astype(jnp.complex64) + 1j * X_i.astype(jnp.complex64)
    Y_ref = A_c @ X_c
    assert jnp.allclose(Y_r, jnp.real(Y_ref), atol=1e-5, rtol=1e-5)
    assert jnp.allclose(Y_i, jnp.imag(Y_ref), atol=1e-5, rtol=1e-5)

    print("KERNEL_OK")
</pallas_src>

<mosaic_0001>
module attributes {stable_mosaic.version = 11 : i64} {
  func.func @_mmi_odd_kernel(%arg0: i32, %arg1: memref<8x1xf32, #tpu.memory_space<vmem>>, %arg2: memref<8x1xf32, #tpu.memory_space<vmem>>, %arg3: memref<8x1xf32, #tpu.memory_space<vmem>>, %arg4: memref<8x256xf32, #tpu.memory_space<vmem>>, %arg5: memref<8x256xf32, #tpu.memory_space<vmem>>, %arg6: memref<8x256xf32, #tpu.memory_space<vmem>>, %arg7: memref<8x256xf32, #tpu.memory_space<vmem>>) attributes {dimension_semantics = [#tpu.dimension_semantics<parallel>], iteration_bounds = array<i64: 3>, scalar_prefetch = 0 : i64, scratch_operands = 0 : i64, tpu.core_type = #tpu.core_type<tc>, window_params = [{pipeline_mode = #tpu.pipeline_mode<synchronous>, transform_indices = @transform_0, window_bounds = array<i64: 8, 1>}, {pipeline_mode = #tpu.pipeline_mode<synchronous>, transform_indices = @transform_1, window_bounds = array<i64: 8, 1>}, {pipeline_mode = #tpu.pipeline_mode<synchronous>, transform_indices = @transform_2, window_bounds = array<i64: 8, 1>}, {transform_indices = @transform_3, window_bounds = array<i64: 8, 256>}, {transform_indices = @transform_4, window_bounds = array<i64: 8, 256>}, {transform_indices = @transform_5, window_bounds = array<i64: 8, 256>}, {transform_indices = @transform_6, window_bounds = array<i64: 8, 256>}]} {
    %c0 = arith.constant 0 : index
    %c0_0 = arith.constant 0 : index
    %0 = vector.load %arg1[%c0, %c0_0] : memref<8x1xf32, #tpu.memory_space<vmem>>, vector<8x1xf32>
    %c0_1 = arith.constant 0 : index
    %c0_2 = arith.constant 0 : index
    %1 = vector.load %arg2[%c0_1, %c0_2] : memref<8x1xf32, #tpu.memory_space<vmem>>, vector<8x1xf32>
    %c0_3 = arith.constant 0 : index
    %c0_4 = arith.constant 0 : index
    %2 = vector.load %arg3[%c0_3, %c0_4] : memref<8x1xf32, #tpu.memory_space<vmem>>, vector<8x1xf32>
    %c0_5 = arith.constant 0 : index
    %c0_6 = arith.constant 0 : index
    %3 = vector.load %arg4[%c0_5, %c0_6] : memref<8x256xf32, #tpu.memory_space<vmem>>, vector<8x256xf32>
    %c0_7 = arith.constant 0 : index
    %c0_8 = arith.constant 0 : index
    %4 = vector.load %arg5[%c0_7, %c0_8] : memref<8x256xf32, #tpu.memory_space<vmem>>, vector<8x256xf32>
    %c7_i32 = arith.constant 7 : i32
    %5 = tpu.dynamic_rotate %3 by %c7_i32 dim 0 : vector<8x256xf32>, i32 -> vector<8x256xf32>
    %c7_i32_9 = arith.constant 7 : i32
    %6 = tpu.dynamic_rotate %4 by %c7_i32_9 dim 0 : vector<8x256xf32>, i32 -> vector<8x256xf32>
    %c1_i32 = arith.constant 1 : i32
    %7 = tpu.dynamic_rotate %3 by %c1_i32 dim 0 : vector<8x256xf32>, i32 -> vector<8x256xf32>
    %c1_i32_10 = arith.constant 1 : i32
    %8 = tpu.dynamic_rotate %4 by %c1_i32_10 dim 0 : vector<8x256xf32>, i32 -> vector<8x256xf32>
    %9 = vector.broadcast %0 : vector<8x1xf32> to vector<8x256xf32>
    %10 = arith.mulf %9, %3 : vector<8x256xf32>
    %11 = vector.broadcast %1 : vector<8x1xf32> to vector<8x256xf32>
    %12 = arith.mulf %11, %6 : vector<8x256xf32>
    %13 = arith.subf %10, %12 : vector<8x256xf32>
    %14 = vector.broadcast %2 : vector<8x1xf32> to vector<8x256xf32>
    %15 = arith.mulf %14, %8 : vector<8x256xf32>
    %16 = arith.subf %13, %15 : vector<8x256xf32>
    %c0_11 = arith.constant 0 : index
    %c0_12 = arith.constant 0 : index
    %17 = vector.load %arg6[%c0_11, %c0_12] : memref<8x256xf32, #tpu.memory_space<vmem>>, vector<8x256xf32>
    tpu.vector_store %arg6[%c0_11, %c0_12], %16 {strides = array<i32>} : memref<8x256xf32, #tpu.memory_space<vmem>>, vector<8x256xf32>,
    %18 = vector.broadcast %0 : vector<8x1xf32> to vector<8x256xf32>
    %19 = arith.mulf %18, %4 : vector<8x256xf32>
    %20 = vector.broadcast %1 : vector<8x1xf32> to vector<8x256xf32>
    %21 = arith.mulf %20, %5 : vector<8x256xf32>
    %22 = arith.addf %19, %21 : vector<8x256xf32>
    %23 = vector.broadcast %2 : vector<8x1xf32> to vector<8x256xf32>
    %24 = arith.mulf %23, %7 : vector<8x256xf32>
    %25 = arith.addf %22, %24 : vector<8x256xf32>
    %c0_13 = arith.constant 0 : index
    %c0_14 = arith.constant 0 : index
    %26 = vector.load %arg7[%c0_13, %c0_14] : memref<8x256xf32, #tpu.memory_space<vmem>>, vector<8x256xf32>
    tpu.vector_store %arg7[%c0_13, %c0_14], %25 {strides = array<i32>} : memref<8x256xf32, #tpu.memory_space<vmem>>, vector<8x256xf32>,
    return
  }
  func.func @transform_0(%arg0: i32) -> (i32, i32) {
    %c0_i32 = arith.constant 0 : i32
    %c0_i32_0 = arith.constant 0 : i32
    %c0_i32_1 = arith.constant 0 : i32
    return %c0_i32, %c0_i32_0 : i32, i32
  }
  func.func @transform_1(%arg0: i32) -> (i32, i32) {
    %c0_i32 = arith.constant 0 : i32
    %c0_i32_0 = arith.constant 0 : i32
    %c0_i32_1 = arith.constant 0 : i32
    return %c0_i32, %c0_i32_0 : i32, i32
  }
  func.func @transform_2(%arg0: i32) -> (i32, i32) {
    %c0_i32 = arith.constant 0 : i32
    %c0_i32_0 = arith.constant 0 : i32
    %c0_i32_1 = arith.constant 0 : i32
    return %c0_i32, %c0_i32_0 : i32, i32
  }
  func.func @transform_3(%arg0: i32) -> (i32, i32) {
    %c0_i32 = arith.constant 0 : i32
    %c0_i32_0 = arith.constant 0 : i32
    return %c0_i32, %arg0 : i32, i32
  }
  func.func @transform_4(%arg0: i32) -> (i32, i32) {
    %c0_i32 = arith.constant 0 : i32
    %c0_i32_0 = arith.constant 0 : i32
    return %c0_i32, %arg0 : i32, i32
  }
  func.func @transform_5(%arg0: i32) -> (i32, i32) {
    %c0_i32 = arith.constant 0 : i32
    %c0_i32_0 = arith.constant 0 : i32
    return %c0_i32, %arg0 : i32, i32
  }
  func.func @transform_6(%arg0: i32) -> (i32, i32) {
    %c0_i32 = arith.constant 0 : i32
    %c0_i32_0 = arith.constant 0 : i32
    return %c0_i32, %arg0 : i32, i32
  }
}

</mosaic_0001>

<llo_original>
// kernel: tpu_custom_call.1
$region0: #{tpu_custom_call.1}
  #allocation0 [shape = 'u32[]', space=smem, size = 0x4, offset = 0x4, fixed_abs, tag = 'smem constant byte address 0x4 - core index']
  #allocation1 [shape = 'u32[144,128]{1,0:T(1,128)}', space=vmem, size = 0x12000, scoped, tag = 'internal scratch']
  %s0 = inlined_call_operand.vmem [shape: f32[8,1], index: 0, kind: input, shape index: {}]
  %s1 = inlined_call_operand.vmem [shape: f32[8,1], index: 1, kind: input, shape index: {}]
  %s2 = inlined_call_operand.vmem [shape: f32[8,1], index: 2, kind: input, shape index: {}]
  %s3 = inlined_call_operand.hbm [shape: f32[8,640], index: 3, kind: input, shape index: {}]
  %s4 = inlined_call_operand.vmem [shape: f32[8,640], index: 4, kind: input, shape index: {}]
  %s5 = inlined_call_operand.hbm [shape: f32[8,640], index: 5, kind: output, shape index: {0}]
  %s6 = inlined_call_operand.hbm [shape: f32[8,640], index: 6, kind: output, shape index: {1}]
  %7 = xla_tuple %s5, %s6
  %s8 = sld [smem:[#allocation0]]
  $region65: #{tpu_custom_call.1} parent=0
    _
  %s10 = ssub.s32 1, %s8
  %s11 = scalar_select 0, %s10, %s8
  $region1: #{tpu_custom_call.1} parent=0
    #allocation2 [shape = 'u8[16384]{0}', space=vmem, size = 0x4000, scoped, tag = 'input window, operand 3']
    #allocation3 [shape = 's32[2]{0}', space=sflag, size = 0x8, scoped, tag = 'scoped memory for tpu_custom_call.1']
    #allocation4 [shape = 's32[2]{0}', space=sflag, size = 0x8, scoped, tag = 'scoped memory for tpu_custom_call.1']
    #allocation5 [shape = 'u8[16384]{0}', space=vmem, size = 0x4000, scoped, tag = 'output window, operand 0']
    #allocation6 [shape = 'u8[16384]{0}', space=vmem, size = 0x4000, scoped, tag = 'output window, operand 1']
    #allocation7 [shape = 's32[2]{0}', space=sflag, size = 0x8, scoped, tag = 'scoped memory for tpu_custom_call.1']
    %12 = vsyncpa [#allocation3], 0
    %s13 = scalar_lea.sflag [#allocation3], 1
    %14 = vsyncpa %s13, 0
    %15 = vsyncpa [#allocation4], 0
    %s16 = scalar_lea.sflag [#allocation4], 1
    %17 = vsyncpa %s16, 0
    %18 = vsyncpa [#allocation7], 0
    %s19 = scalar_lea.sflag [#allocation7], 1
    %20 = vsyncpa %s19, 0
    loop: start=0, step=1, limit=5
    $region2: #{tpu_custom_call.1} parent=1 // loop_pre_header
      _
    $region3: #{tpu_custom_call.1} parent=1 // loop_header
      %s22 = sphi 0, %s26
      %p23 = scmp.ge.s32.totalorder %s22, 5
      %s30 = sphi 0, %s30
      %s32 = sphi 0, %s30
      %s33 = sphi 0, %s32
      %s47 = sphi 0, %s33
      %s51 = sphi 0, %s51
      %s53 = sphi 0, %s51
      %s54 = sphi 0, %s53
      %s68 = sphi 0, %s54
      %s72 = sphi 0, %s72
      %s74 = sphi 0, %s72
      %s75 = sphi 0, %s74
      %s89 = sphi 0, %s75
      %s95 = sphi 0, %s97
      %s98 = sphi 0, %s95
      %s99 = sphi 0, %s98
      %s115 = sphi 0, %s99
      %s121 = sphi 0, %s123
      %s124 = sphi 0, %s121
      %s125 = sphi 0, %s124
      %s141 = sphi 0, %s125
      %s147 = sphi 0, %s149
      %s150 = sphi 0, %s147
      %s151 = sphi 0, %s150
      %s167 = sphi 0, %s151
      %s173 = sphi 0, %s175
      %s176 = sphi 0, %s173
      %s177 = sphi 0, %s176
      %s193 = sphi 0, %s177
    $region4: #{tpu_custom_call.1} parent=1 // loop_header_branch
      %25 = sbr.rel (%p23) target = $region8
    $region5: #{tpu_custom_call.1} parent=1 // loop_body
      %s27 = ssub.s32 %s22, 1
      %s28 = ssub.s32 %s22, 2
      %s29 = sadd.s32 %s22, 1
      %s31 = sadd.s32 %s30, 1
      %p34 = scmp.eq.s32.totalorder %s22, 2
      %p35 = scmp.ne.s32.totalorder %s30, %s32
      %p36 = scmp.eq.s32.totalorder %s22, 0
      %p37 = por %p35, %p36
      %p38 = scmp.ne.s32.totalorder %s30, %s32
      %p39 = scmp.eq.s32.totalorder %s27, 2
      %p40 = por %p38, %p39
      %p41 = scmp.ne.s32.totalorder %s32, %s33
      %p42 = scmp.eq.s32.totalorder %s27, 0
      %p43 = por %p41, %p42
      %p44 = scmp.ne.s32.totalorder %s32, %s33
      %p45 = scmp.eq.s32.totalorder %s28, 2
      %p46 = por %p44, %p45
      %p48 = scmp.ne.s32.totalorder %s33, %s47
      %p49 = scmp.eq.s32.totalorder %s28, 0
      %p50 = por %p48, %p49
      %s52 = sadd.s32 %s51, 1
      %p55 = scmp.eq.s32.totalorder %s22, 2
      %p56 = scmp.ne.s32.totalorder %s51, %s53
      %p57 = scmp.eq.s32.totalorder %s22, 0
      %p58 = por %p56, %p57
      %p59 = scmp.ne.s32.totalorder %s51, %s53
      %p60 = scmp.eq.s32.totalorder %s27, 2
      %p61 = por %p59, %p60
      %p62 = scmp.ne.s32.totalorder %s53, %s54
      %p63 = scmp.eq.s32.totalorder %s27, 0
      %p64 = por %p62, %p63
      %p65 = scmp.ne.s32.totalorder %s53, %s54
      %p66 = scmp.eq.s32.totalorder %s28, 2
      %p67 = por %p65, %p66
      %p69 = scmp.ne.s32.totalorder %s54, %s68
      %p70 = scmp.eq.s32.totalorder %s28, 0
      %p71 = por %p69, %p70
      %s73 = sadd.s32 %s72, 1
      %p76 = scmp.eq.s32.totalorder %s22, 2
      %p77 = scmp.ne.s32.totalorder %s72, %s74
      %p78 = scmp.eq.s32.totalorder %s22, 0
      %p79 = por %p77, %p78
      %p80 = scmp.ne.s32.totalorder %s72, %s74
      %p81 = scmp.eq.s32.totalorder %s27, 2
      %p82 = por %p80, %p81
      %p83 = scmp.ne.s32.totalorder %s74, %s75
      %p84 = scmp.eq.s32.totalorder %s27, 0
      %p85 = por %p83, %p84
      %p86 = scmp.ne.s32.totalorder %s74, %s75
      %p87 = scmp.eq.s32.totalorder %s28, 2
      %p88 = por %p86, %p87
      %p90 = scmp.ne.s32.totalorder %s75, %s89
      %p91 = scmp.eq.s32.totalorder %s28, 0
      %p92 = por %p90, %p91
      %s93 = ssub.s32 %s22, %s29
      %p94 = scmp.eq.s32.totalorder %s93, 0
      %s96 = sadd.s32 %s95, 1
      %s97 = scalar_select %p94, %s95, %s96
      %p100 = pneg %p94
      %p101 = scmp.eq.s32.totalorder %s22, 2
      %p102 = por %p100, %p101
      %p103 = scmp.ne.s32.totalorder %s95, %s98
      %p104 = scmp.eq.s32.totalorder %s22, 0
      %p105 = por %p103, %p104
      %p106 = scmp.ne.s32.totalorder %s95, %s98
      %p107 = scmp.eq.s32.totalorder %s27, 2
      %p108 = por %p106, %p107
      %p109 = scmp.ne.s32.totalorder %s98, %s99
      %p110 = scmp.eq.s32.totalorder %s27, 0
      %p111 = por %p109, %p110
      %p112 = scmp.ne.s32.totalorder %s98, %s99
      %p113 = scmp.eq.s32.totalorder %s28, 2
      %p114 = por %p112, %p113
      %p116 = scmp.ne.s32.totalorder %s99, %s115
      %p117 = scmp.eq.s32.totalorder %s28, 0
      %p118 = por %p116, %p117
      %s119 = ssub.s32 %s22, %s29
      %p120 = scmp.eq.s32.totalorder %s119, 0
      %s122 = sadd.s32 %s121, 1
      %s123 = scalar_select %p120, %s121, %s122
      %p126 = pneg %p120
      %p127 = scmp.eq.s32.totalorder %s22, 2
      %p128 = por %p126, %p127
      %p129 = scmp.ne.s32.totalorder %s121, %s124
      %p130 = scmp.eq.s32.totalorder %s22, 0
      %p131 = por %p129, %p130
      %p132 = scmp.ne.s32.totalorder %s121, %s124
      %p133 = scmp.eq.s32.totalorder %s27, 2
      %p134 = por %p132, %p133
      %p135 = scmp.ne.s32.totalorder %s124, %s125
      %p136 = scmp.eq.s32.totalorder %s27, 0
      %p137 = por %p135, %p136
      %p138 = scmp.ne.s32.totalorder %s124, %s125
      %p139 = scmp.eq.s32.totalorder %s28, 2
      %p140 = por %p138, %p139
      %p142 = scmp.ne.s32.totalorder %s125, %s141
      %p143 = scmp.eq.s32.totalorder %s28, 0
      %p144 = por %p142, %p143
      %s145 = ssub.s32 %s22, %s29
      %p146 = scmp.eq.s32.totalorder %s145, 0
      %s148 = sadd.s32 %s147, 1
      %s149 = scalar_select %p146, %s147, %s148
      %p152 = pneg %p146
      %p153 = scmp.eq.s32.totalorder %s22, 2
      %p154 = por %p152, %p153
      %p155 = scmp.ne.s32.totalorder %s147, %s150
      %p156 = scmp.eq.s32.totalorder %s22, 0
      %p157 = por %p155, %p156
      %p158 = scmp.ne.s32.totalorder %s147, %s150
      %p159 = scmp.eq.s32.totalorder %s27, 2
      %p160 = por %p158, %p159
      %p161 = scmp.ne.s32.totalorder %s150, %s151
      %p162 = scmp.eq.s32.totalorder %s27, 0
      %p163 = por %p161, %p162
      %p164 = scmp.ne.s32.totalorder %s150, %s151
      %p165 = scmp.eq.s32.totalorder %s28, 2
      %p166 = por %p164, %p165
      %p168 = scmp.ne.s32.totalorder %s151, %s167
      %p169 = scmp.eq.s32.totalorder %s28, 0
      %p170 = por %p168, %p169
      %s171 = ssub.s32 %s22, %s29
      %p172 = scmp.eq.s32.totalorder %s171, 0
      %s174 = sadd.s32 %s173, 1
      %s175 = scalar_select %p172, %s173, %s174
      %p178 = pneg %p172
      %p179 = scmp.eq.s32.totalorder %s22, 2
      %p180 = por %p178, %p179
      %p181 = scmp.ne.s32.totalorder %s173, %s176
      %p182 = scmp.eq.s32.totalorder %s22, 0
      %p183 = por %p181, %p182
      %p184 = scmp.ne.s32.totalorder %s173, %s176
      %p185 = scmp.eq.s32.totalorder %s27, 2
      %p186 = por %p184, %p185
      %p187 = scmp.ne.s32.totalorder %s176, %s177
      %p188 = scmp.eq.s32.totalorder %s27, 0
      %p189 = por %p187, %p188
      %p190 = scmp.ne.s32.totalorder %s176, %s177
      %p191 = scmp.eq.s32.totalorder %s28, 2
      %p192 = por %p190, %p191
      %p194 = scmp.ne.s32.totalorder %s177, %s193
      %p195 = scmp.eq.s32.totalorder %s28, 0
      %p196 = por %p194, %p195
      %p197 = scmp.le.s32.totalorder 1, %s22
      %p198 = scmp.lt.s32.totalorder %s22, 4
      %p199 = pnand %p197, %p198
      %p200 = pneg %p199
      // Predicated region
      $region9: #{tpu_custom_call.1} parent=5 // pred_check
        _
      $region10: #{tpu_custom_call.1} parent=5 // pred_check_branch
        %202 = sbr.rel (%p199) target = $region12
      $region11: #{tpu_custom_call.1} parent=5 // pred_region
        %s203 = ssub.s32 %s22, 1
        // Predicated region
        $region13: #{tpu_custom_call.1} parent=11 // pred_check
          %p204 = pneg %p43
        $region14: #{tpu_custom_call.1} parent=11 // pred_check_branch
          %206 = sbr.rel (%p204) target = $region16
        $region15: #{tpu_custom_call.1} parent=11 // pred_region
          _
        $region16: #{tpu_custom_call.1} parent=11 // pred_fallthru
          _
        // Predicated region
        $region17: #{tpu_custom_call.1} parent=11 // pred_check
          %p207 = pneg %p64
        $region18: #{tpu_custom_call.1} parent=11 // pred_check_branch
          %209 = sbr.rel (%p207) target = $region20
        $region19: #{tpu_custom_call.1} parent=11 // pred_region
          _
        $region20: #{tpu_custom_call.1} parent=11 // pred_fallthru
          _
        // Predicated region
        $region21: #{tpu_custom_call.1} parent=11 // pred_check
          %p210 = pneg %p85
        $region22: #{tpu_custom_call.1} parent=11 // pred_check_branch
          %212 = sbr.rel (%p210) target = $region24
        $region23: #{tpu_custom_call.1} parent=11 // pred_region
          _
        $region24: #{tpu_custom_call.1} parent=11 // pred_fallthru
          _
      $region12: #{tpu_custom_call.1} parent=5 // pred_fallthru
        _
      %p213 = scmp.lt.s32.totalorder %s22, 3
      // Predicated region
      $region25: #{tpu_custom_call.1} parent=5 // pred_check
        %p214 = pneg %p213
      $region26: #{tpu_custom_call.1} parent=5 // pred_check_branch
        %216 = sbr.rel (%p214) target = $region28
      $region27: #{tpu_custom_call.1} parent=5 // pred_region
        // Predicated region
        $region29: #{tpu_custom_call.1} parent=27 // pred_check
          %p217 = pneg %p105
        $region30: #{tpu_custom_call.1} parent=27 // pred_check_branch
          %219 = sbr.rel (%p217) target = $region32
        $region31: #{tpu_custom_call.1} parent=27 // pred_region
          %s220 = sand.u32 %s95, 1
          %s221 = scalar_lea.sflag [#allocation3], %s220
          %s222 = sand.u32 %s95, 1
          %s223 = smul.addr %s222, 16
          %s224 = scalar_lea.vmem [#allocation2], %s223
          %s225 = smul.u32 2, %s22
          %s226 = ssub.s32 5, %s225
          %p227 = scmp.lt.s32.totalorder %s226, 2
          %s228 = scalar_select %p227, %s226, 2
          %s229 = smul.u32 128, %s228
          %s231 = ssub.s32 256, %s229
          %232 = vsyncadd %s221, %s231
          %p233 = scmp.ne.s32.totalorder 0, %s229
          %s234 = smul.addr %s225, 128
          %s235 = scalar_lea.hbm %s3, %s234
          %s236 = smul.u32 %s228, 8
          %s237 = sshll.u32 %s236, 4
          %s238 = sshll.u32 %s224, 4
          %s239 = int_to_ptr.vmem [resolvable:$true] %s238
          %241 = dma.hbm_to_vmem [thread:$0]  (%p233), %s235, %s237, %s239, %s221
        $region32: #{tpu_custom_call.1} parent=27 // pred_fallthru
          _
        // Predicated region
        $region33: #{tpu_custom_call.1} parent=27 // pred_check
          %p242 = pneg %p131
        $region34: #{tpu_custom_call.1} parent=27 // pred_check_branch
          %244 = sbr.rel (%p242) target = $region36
        $region35: #{tpu_custom_call.1} parent=27 // pred_region
          %s245 = smul.u32 2, %s22
          %s246 = ssub.s32 5, %s245
          %p247 = scmp.lt.s32.totalorder %s246, 2
          %s248 = scalar_select %p247, %s246, 2
          %s249 = smul.u32 128, %s248
          %p250 = scmp.lt.s32.totalorder %s245, 4
          %s251 = scalar_select %p250, %s245, 4
          %s252 = smul.addr %s251, 8
          %s253 = scalar_lea.vmem %s4, %s252
          %s254 = smul.u32 2, %s22
          %s255 = ssub.s32 5, %s254
          %p256 = scmp.lt.s32.totalorder %s255, 2
          %s257 = scalar_select %p256, %s255, 2
          %s258 = smul.u32 128, %s257
        $region36: #{tpu_custom_call.1} parent=27 // pred_fallthru
          _
      $region28: #{tpu_custom_call.1} parent=5 // pred_fallthru
        _
      %p259 = scmp.le.s32.totalorder 1, %s22
      %p260 = scmp.lt.s32.totalorder %s22, 4
      %p261 = pnand %p259, %p260
      %p262 = pneg %p261
      // Predicated region
      $region37: #{tpu_custom_call.1} parent=5 // pred_check
        _
      $region38: #{tpu_custom_call.1} parent=5 // pred_check_branch
        %264 = sbr.rel (%p261) target = $region40
      $region39: #{tpu_custom_call.1} parent=5 // pred_region
        %s265 = ssub.s32 %s22, 1
        %s266 = sand.u32 %s98, 1
        %s267 = scalar_lea.sflag [#allocation3], %s266
        %s268 = sand.u32 %s98, 1
        %s269 = smul.addr %s268, 16
        %s270 = scalar_lea.vmem [#allocation2], %s269
        // Predicated region
        $region41: #{tpu_custom_call.1} parent=39 // pred_check
          %p271 = pneg %p111
        $region42: #{tpu_custom_call.1} parent=39 // pred_check_branch
          %273 = sbr.rel (%p271) target = $region44
        $region43: #{tpu_custom_call.1} parent=39 // pred_region
          %274 = dma.done %s267, 256
        $region44: #{tpu_custom_call.1} parent=39 // pred_fallthru
          _
        %p275 = pneg %p43
        %p276 = pneg %p40
        %p277 = pneg %p64
        %p278 = pneg %p61
        %p279 = pneg %p85
        %p280 = pneg %p82
        %s281 = sand.u32 %s98, 1
        %s282 = scalar_lea.sflag [#allocation3], %s281
        %s283 = sand.u32 %s98, 1
        %s284 = smul.addr %s283, 16
        %s285 = scalar_lea.vmem [#allocation2], %s284
        %p286 = pneg %p111
        %p287 = pneg %p108
        %s288 = smul.u32 2, %s27
        %s289 = ssub.s32 5, %s288
        %p290 = scmp.lt.s32.totalorder %s289, 2
        %s291 = scalar_select %p290, %s289, 2
        %s292 = smul.u32 128, %s291
        %p293 = scmp.lt.s32.totalorder %s288, 4
        %s294 = scalar_select %p293, %s288, 4
        %s295 = smul.addr %s294, 8
        %s296 = scalar_lea.vmem %s4, %s295
        %p297 = pneg %p137
        %p298 = pneg %p134
        %p299 = pneg %p163
        %p300 = pneg %p160
        %s301 = sand.u32 %s150, 1
        %s302 = scalar_lea.sflag [#allocation4], %s301
        %s303 = sand.u32 %s150, 1
        %s304 = smul.addr %s303, 16
        %s305 = scalar_lea.vmem [#allocation5], %s304
        %p306 = pneg %p189
        %p307 = pneg %p186
        %s308 = sand.u32 %s176, 1
        %s309 = scalar_lea.sflag [#allocation7], %s308
        %s310 = sand.u32 %s176, 1
        %s311 = smul.addr %s310, 16
        %s312 = scalar_lea.vmem [#allocation6], %s311
        %s313 = smul.u32 2, %s27
        %s314 = ssub.s32 5, %s313
        %p315 = scmp.lt.s32.totalorder %s314, 2
        %s316 = scalar_select %p315, %s314, 2
        %s317 = smul.u32 128, %s316
        %s318 = smul.u32 2, %s27
        %s319 = ssub.s32 5, %s318
        %p320 = scmp.lt.s32.totalorder %s319, 2
        %s321 = scalar_select %p320, %s319, 2
        %s322 = smul.u32 128, %s321
        %p323 = scmp.lt.s32.totalorder %s318, 4
        %s324 = scalar_select %p323, %s318, 4
        %s325 = smul.addr %s324, 8
        %s326 = scalar_lea.vmem %s4, %s325
        %s327 = smul.u32 2, %s27
        %s328 = ssub.s32 5, %s327
        %p329 = scmp.lt.s32.totalorder %s328, 2
        %s330 = scalar_select %p329, %s328, 2
        %s331 = smul.u32 128, %s330
        %s332 = smul.u32 2, %s27
        %s333 = ssub.s32 5, %s332
        %p334 = scmp.lt.s32.totalorder %s333, 2
        %s335 = scalar_select %p334, %s333, 2
        %s336 = smul.u32 128, %s335
        %s337 = smul.u32 2, %s27
        %s338 = ssub.s32 5, %s337
        %p339 = scmp.lt.s32.totalorder %s338, 2
        %s340 = scalar_select %p339, %s338, 2
        %s341 = smul.u32 128, %s340
        %v342 = vld [vmem:[%s0] sm:$0xff]
        %v343 = vld [vmem:[%s1] sm:$0xff]
        %v344 = vld [vmem:[%s2] sm:$0xff]
        %v345 = vld [vmem:[%s270] sm:$0xff]
        %v346 = vld [vmem:[%s270 + $0x8] sm:$0xff]
        %v347 = vld [vmem:[%s326] sm:$0xff]
        %v348 = vld [vmem:[%s326 + $0x8] sm:$0xff]
        %v349 = vrot.slane %v345, 1
        %v350 = vrot.slane %v346, 1
        %v351 = vrot.slane %v347, 1
        %v352 = vrot.slane %v348, 1
        %v353 = vrot.slane %v345, 7
        %v354 = vrot.slane %v346, 7
        %v355 = vrot.slane %v347, 7
        %v356 = vrot.slane %v348, 7
        %358 = vset.pattern.permute.xlu0 0
        %359 = vperm.xlu0 %358, %v342
        %v360 = vpop.permute.xlu0 %359
        %v362 = vmul.f32 %v360, %v345
        %v363 = vmul.f32 %v360, %v346
        %365 = vset.pattern.permute.xlu0 0
        %366 = vperm.xlu0 %365, %v343
        %v367 = vpop.permute.xlu0 %366
        %v369 = vmul.f32 %v367, %v351
        %v370 = vmul.f32 %v367, %v352
        %v371 = vsub.f32 %v362, %v369
        %v372 = vsub.f32 %v363, %v370
        %374 = vset.pattern.permute.xlu0 0
        %375 = vperm.xlu0 %374, %v344
        %v376 = vpop.permute.xlu0 %375
        %v378 = vmul.f32 %v376, %v355
        %v379 = vmul.f32 %v376, %v356
        %v380 = vsub.f32 %v371, %v378
        %v381 = vsub.f32 %v372, %v379
        %382 = vst [vmem:[%s305] sm:$0xff] %v380
        %383 = vst [vmem:[%s305 + $0x8] sm:$0xff] %v381
        %v384 = vmul.f32 %v360, %v347
        %v385 = vmul.f32 %v360, %v348
        %v386 = vmul.f32 %v367, %v349
        %v387 = vmul.f32 %v367, %v350
        %v388 = vadd.f32 %v384, %v386
        %v389 = vadd.f32 %v385, %v387
        %v390 = vmul.f32 %v376, %v353
        %v391 = vmul.f32 %v376, %v354
        %v392 = vadd.f32 %v388, %v390
        %v393 = vadd.f32 %v389, %v391
        %394 = vst [vmem:[%s312] sm:$0xff] %v392
        %395 = vst [vmem:[%s312 + $0x8] sm:$0xff] %v393
        %s396 = sand.u32 %s150, 1
        %s397 = scalar_lea.sflag [#allocation4], %s396
        %s398 = sand.u32 %s150, 1
        %s399 = smul.addr %s398, 16
        %s400 = scalar_lea.vmem [#allocation5], %s399
        %s401 = sand.u32 %s176, 1
        %s402 = scalar_lea.sflag [#allocation7], %s401
        %s403 = sand.u32 %s176, 1
        %s404 = smul.addr %s403, 16
        %s405 = scalar_lea.vmem [#allocation6], %s404
        // Predicated region
        $region45: #{tpu_custom_call.1} parent=39 // pred_check
          %p406 = pneg %p160
        $region46: #{tpu_custom_call.1} parent=39 // pred_check_branch
          %408 = sbr.rel (%p406) target = $region48
        $region47: #{tpu_custom_call.1} parent=39 // pred_region
          %s409 = smul.u32 2, %s27
          %s410 = ssub.s32 5, %s409
          %p411 = scmp.lt.s32.totalorder %s410, 2
          %s412 = scalar_select %p411, %s410, 2
          %s413 = smul.u32 128, %s412
          %s415 = ssub.s32 256, %s413
          %416 = vsyncadd %s397, %s415
          %p417 = scmp.ne.s32.totalorder 0, %s413
          %s418 = smul.addr %s409, 128
          %s419 = scalar_lea.hbm %s5, %s418
          %s420 = smul.u32 %s412, 8
          %s421 = sshll.u32 %s420, 4
          %s422 = sshll.u32 %s400, 4
          %s423 = int_to_ptr.vmem [resolvable:$true] %s422
          %425 = dma.vmem_to_hbm [thread:$0]  (%p417), %s423, %s421, %s419, %s397
        $region48: #{tpu_custom_call.1} parent=39 // pred_fallthru
          _
        // Predicated region
        $region49: #{tpu_custom_call.1} parent=39 // pred_check
          %p426 = pneg %p186
        $region50: #{tpu_custom_call.1} parent=39 // pred_check_branch
          %428 = sbr.rel (%p426) target = $region52
        $region51: #{tpu_custom_call.1} parent=39 // pred_region
          %s429 = smul.u32 2, %s27
          %s430 = ssub.s32 5, %s429
          %p431 = scmp.lt.s32.totalorder %s430, 2
          %s432 = scalar_select %p431, %s430, 2
          %s433 = smul.u32 128, %s432
          %s435 = ssub.s32 256, %s433
          %436 = vsyncadd %s402, %s435
          %p437 = scmp.ne.s32.totalorder 0, %s433
          %s438 = smul.addr %s429, 128
          %s439 = scalar_lea.hbm %s6, %s438
          %s440 = smul.u32 %s432, 8
          %s441 = sshll.u32 %s440, 4
          %s442 = sshll.u32 %s405, 4
          %s443 = int_to_ptr.vmem [resolvable:$true] %s442
          %445 = dma.vmem_to_hbm [thread:$0]  (%p437), %s443, %s441, %s439, %s402
        $region52: #{tpu_custom_call.1} parent=39 // pred_fallthru
          _
      $region40: #{tpu_custom_call.1} parent=5 // pred_fallthru
        _
      %p446 = scmp.le.s32.totalorder 2, %s22
      // Predicated region
      $region53: #{tpu_custom_call.1} parent=5 // pred_check
        %p447 = pneg %p446
      $region54: #{tpu_custom_call.1} parent=5 // pred_check_branch
        %449 = sbr.rel (%p447) target = $region56
      $region55: #{tpu_custom_call.1} parent=5 // pred_region
        %s450 = ssub.s32 %s22, 2
        // Predicated region
        $region57: #{tpu_custom_call.1} parent=55 // pred_check
          %p451 = pneg %p166
        $region58: #{tpu_custom_call.1} parent=55 // pred_check_branch
          %453 = sbr.rel (%p451) target = $region60
        $region59: #{tpu_custom_call.1} parent=55 // pred_region
          %s454 = sand.u32 %s151, 1
          %s455 = scalar_lea.sflag [#allocation4], %s454
          %s456 = sand.u32 %s151, 1
          %s457 = smul.addr %s456, 16
          %s458 = scalar_lea.vmem [#allocation5], %s457
          %459 = dma.done %s455, 256
        $region60: #{tpu_custom_call.1} parent=55 // pred_fallthru
          _
        // Predicated region
        $region61: #{tpu_custom_call.1} parent=55 // pred_check
          %p460 = pneg %p192
        $region62: #{tpu_custom_call.1} parent=55 // pred_check_branch
          %462 = sbr.rel (%p460) target = $region64
        $region63: #{tpu_custom_call.1} parent=55 // pred_region
          %s463 = sand.u32 %s177, 1
          %s464 = scalar_lea.sflag [#allocation7], %s463
          %s465 = sand.u32 %s177, 1
          %s466 = smul.addr %s465, 16
          %s467 = scalar_lea.vmem [#allocation6], %s466
          %468 = dma.done %s464, 256
        $region64: #{tpu_custom_call.1} parent=55 // pred_fallthru
          _
      $region56: #{tpu_custom_call.1} parent=5 // pred_fallthru
        _
    $region6: #{tpu_custom_call.1} parent=1 // loop_footer
      %s26 = sadd.s32 1, %s22
    $region7: #{tpu_custom_call.1} parent=1 // loop_footer_branch
      %21 = sbr.rel target = $region3
    $region8: #{tpu_custom_call.1} parent=1 // loop_exit
      _
    %469 = vsyncpa [#allocation3], 1
    %s470 = scalar_lea.sflag [#allocation3], 1
    %471 = vsyncpa %s470, 1
    %472 = vsyncpa [#allocation4], 1
    %s473 = scalar_lea.sflag [#allocation4], 1
    %474 = vsyncpa %s473, 1
    %475 = vsyncpa [#allocation7], 1
    %s476 = scalar_lea.sflag [#allocation7], 1
    %477 = vsyncpa %s476, 1

</llo_original>
